<compile_context>
chip_gen: v5e
topology: v5e:2x2
jax: 0.10.0
libtpu: 0.0.40
codegen_flags: <defaults>
</compile_context>

<pallas_src>
import functools

import jax
import jax.numpy as jnp
from jax.experimental import pallas as pl
from jax.experimental.pallas import tpu as pltpu


def _probe_kernel(x_ref, w_ref, b_ref, o_ref, acc_ref, *, seq_len, seq_tile, ragged):
    # x_ref:   (TB, TS, H)  VMEM, native dtype
    # w_ref:   (1, H)       VMEM
    # b_ref:   (1,)         SMEM (f32 scalar)
    # o_ref:   (TB, 1)      VMEM, f32
    # acc_ref: (TB, H)      VMEM scratch, f32 (persists across the seq grid axis)
    s = pl.program_id(1)

    @pl.when(s == 0)
    def _init():
        acc_ref[...] = jnp.zeros_like(acc_ref)

    x = x_ref[...]                                             # (TB, TS, H)
    if ragged:
        # Zero out padding rows of the final (partial) seq tile.
        pos = jax.lax.broadcasted_iota(jnp.int32, (x.shape[0], x.shape[1], 1), 1)
        pos = pos + s * seq_tile
        x = jnp.where(pos < seq_len, x, jnp.zeros((), dtype=x.dtype))

    # Reduce over the seq-tile axis; promote to f32 only inside the accumulation.
    acc_ref[...] += jnp.sum(x, axis=1, dtype=jnp.float32)      # (TB, H)

    @pl.when(s == pl.num_programs(1) - 1)
    def _finalize():
        w = w_ref[...].astype(jnp.float32)                     # (1, H)
        bias = b_ref[0]                                        # f32 scalar
        inv_s = jnp.float32(1.0 / seq_len)                     # hoisted reciprocal
        # mean_s(x @ W.T + b) == (sum_s x) · w / S + b
        y = jnp.sum(acc_ref[...] * w, axis=-1, keepdims=True)  # (TB, 1)
        o_ref[...] = (y * inv_s + bias).astype(o_ref.dtype)


def probe_forward(x, weight, bias, *, target_tile_bytes=2 * 1024 * 1024):
    """x: (B, S, H), weight: (1, H), bias: (1,) -> (B, 1) float32."""
    B, S, H = x.shape
    itemsize = jnp.dtype(x.dtype).itemsize

    # Batch tile: output block (TB, 1) needs TB % 8 == 0 or TB == B.
    TB = 8 if (B >= 8 and B % 8 == 0) else B

    # Seq tile: target ~2 MiB per x buffer (2 pipeline buffers + (TB,H) f32 acc
    # + weight stay far below the 64 MiB v7x VMEM / 32 MiB scoped limit).
    ts = target_tile_bytes // max(1, TB * H * itemsize)
    ts = max(8, (ts // 8) * 8)                 # sublane-aligned
    TS = S if ts >= S else ts                  # full S or a multiple of 8
    ragged = (S % TS) != 0

    grid = (pl.cdiv(B, TB), pl.cdiv(S, TS))    # reduction (seq) axis last

    kernel = functools.partial(
        _probe_kernel, seq_len=S, seq_tile=TS, ragged=ragged
    )

    return pl.pallas_call(
        kernel,
        out_shape=jax.ShapeDtypeStruct((B, 1), jnp.float32),
        grid=grid,
        in_specs=[
            pl.BlockSpec((TB, TS, H), lambda b, s: (b, s, 0)),       # x  -> VMEM tiles
            pl.BlockSpec((1, H), lambda b, s: (0, 0)),               # W  -> VMEM
            pl.BlockSpec(memory_space=pltpu.MemorySpace.SMEM),       # b  -> SMEM scalar
        ],
        out_specs=pl.BlockSpec((TB, 1), lambda b, s: (b, 0)),
        scratch_shapes=[pltpu.VMEM((TB, H), jnp.float32)],           # f32 accumulator
        compiler_params=pltpu.CompilerParams(
            dimension_semantics=("parallel", "arbitrary"),           # batch across TCs
            vmem_limit_bytes=32 * 1024 * 1024,
        ),
    )(x, weight, bias.astype(jnp.float32))


def init_probe_params(key, hidden_size):
    # nn.init.kaiming_normal_(weight, mode='fan_in', nonlinearity='relu'):
    #   std = gain / sqrt(fan_in) = sqrt(2) / sqrt(hidden_size)
    std = (2.0 / hidden_size) ** 0.5
    weight = jax.random.normal(key, (1, hidden_size), dtype=jnp.float32) * std
    bias = jnp.zeros((1,), dtype=jnp.float32)  # nn.init.zeros_(bias)
    return weight, bias


def _reference(x, weight, bias):
    # Pure-JAX reference of the PyTorch forward: (x @ W.T + b).mean(dim=1)
    y = x.astype(jnp.float32) @ weight.astype(jnp.float32).T + bias.astype(jnp.float32)
    return jnp.mean(y, axis=1)  # (B, 1)


if __name__ == "__main__":
    key = jax.random.PRNGKey(0)
    k_x, k_w, k_x2 = jax.random.split(key, 3)

    # --- small test matching the module's forward (single-tile path) ---
    B, S, H = 2, 8, 32
    x = jax.random.normal(k_x, (B, S, H), dtype=jnp.float32)
    weight, bias = init_probe_params(k_w, H)

    out = probe_forward(x, weight, bias)
    out = jax.block_until_ready(out)
    ref = _reference(x, weight, bias)
    assert out.shape == (B, 1), out.shape
    assert jnp.allclose(out, ref, atol=1e-5, rtol=1e-5), (out, ref)

    # --- multi-tile + ragged-seq path (tiny target tile forces many grid steps) ---
    B2, S2, H2 = 2, 203, 128
    x2 = jax.random.normal(k_x2, (B2, S2, H2), dtype=jnp.float32)
    w2, b2 = init_probe_params(k_w, H2)

    out2 = probe_forward(x2, w2, b2, target_tile_bytes=4096)
    out2 = jax.block_until_ready(out2)
    ref2 = _reference(x2, w2, b2)
    assert out2.shape == (B2, 1), out2.shape
    assert jnp.allclose(out2, ref2, atol=1e-4, rtol=1e-4), (out2, ref2)

    print("KERNEL_OK")
</pallas_src>

<mosaic_0001>
module attributes {stable_mosaic.version = 11 : i64} {
  func.func @_probe_kernel(%arg0: i32, %arg1: i32, %arg2: memref<2x8x32xf32, #tpu.memory_space<vmem>>, %arg3: memref<1x32xf32, #tpu.memory_space<vmem>>, %arg4: memref<1xf32, #tpu.memory_space<smem>>, %arg5: memref<2x1xf32, #tpu.memory_space<vmem>>, %arg6: memref<2x32xf32, #tpu.memory_space<vmem>>) attributes {dimension_semantics = [#tpu.dimension_semantics<parallel>, #tpu.dimension_semantics<arbitrary>], iteration_bounds = array<i64: 1, 1>, scalar_prefetch = 0 : i64, scratch_operands = 1 : i64, tpu.core_type = #tpu.core_type<tc>, window_params = [{transform_indices = @transform_0, window_bounds = array<i64: 2, 8, 32>}, {pipeline_mode = #tpu.pipeline_mode<synchronous>, transform_indices = @transform_1, window_bounds = array<i64: 1, 32>}, {transform_indices = @transform_2, window_bounds = array<i64: 1>}, {transform_indices = @transform_3, window_bounds = array<i64: 2, 1>}]} {
    %c0_i32 = arith.constant 0 : i32
    %0 = arith.cmpi eq, %arg1, %c0_i32 : i32
    %1 = arith.extui %0 : i1 to i32
    %c0_i32_0 = arith.constant 0 : i32
    %2 = arith.cmpi ne, %1, %c0_i32_0 : i32
    scf.if %2 {
      %cst_9 = arith.constant 0.000000e+00 : f32
      %11 = vector.broadcast %cst_9 : f32 to vector<2x32xf32>
      %c0_10 = arith.constant 0 : index
      %c0_11 = arith.constant 0 : index
      %12 = vector.load %arg6[%c0_10, %c0_11] : memref<2x32xf32, #tpu.memory_space<vmem>>, vector<2x32xf32>
      tpu.vector_store %arg6[%c0_10, %c0_11], %11 {strides = array<i32>} : memref<2x32xf32, #tpu.memory_space<vmem>>, vector<2x32xf32>,
    } else {
    }
    %c0 = arith.constant 0 : index
    %c0_1 = arith.constant 0 : index
    %c0_2 = arith.constant 0 : index
    %3 = vector.load %arg2[%c0, %c0_1, %c0_2] : memref<2x8x32xf32, #tpu.memory_space<vmem>>, vector<2x8x32xf32>
    %c0_3 = arith.constant 0 : index
    %c0_4 = arith.constant 0 : index
    %4 = vector.load %arg6[%c0_3, %c0_4] : memref<2x32xf32, #tpu.memory_space<vmem>>, vector<2x32xf32>
    %cst = arith.constant dense<0.000000e+00> : vector<2x32xf32>
    %5 = vector.multi_reduction <add>, %3, %cst [1] : vector<2x8x32xf32> to vector<2x32xf32>
    %6 = arith.addf %4, %5 : vector<2x32xf32>
    %c0_5 = arith.constant 0 : index
    %c0_6 = arith.constant 0 : index
    %7 = vector.load %arg6[%c0_5, %c0_6] : memref<2x32xf32, #tpu.memory_space<vmem>>, vector<2x32xf32>
    tpu.vector_store %arg6[%c0_5, %c0_6], %6 {strides = array<i32>} : memref<2x32xf32, #tpu.memory_space<vmem>>, vector<2x32xf32>,
    %c0_i32_7 = arith.constant 0 : i32
    %8 = arith.cmpi eq, %arg1, %c0_i32_7 : i32
    %9 = arith.extui %8 : i1 to i32
    %c0_i32_8 = arith.constant 0 : i32
    %10 = arith.cmpi ne, %9, %c0_i32_8 : i32
    scf.if %10 {
      %c0_9 = arith.constant 0 : index
      %c0_10 = arith.constant 0 : index
      %11 = vector.load %arg3[%c0_9, %c0_10] : memref<1x32xf32, #tpu.memory_space<vmem>>, vector<1x32xf32>
      %c0_11 = arith.constant 0 : index
      %12 = memref.load %arg4[%c0_11] : memref<1xf32, #tpu.memory_space<smem>>
      %c0_12 = arith.constant 0 : index
      %c0_13 = arith.constant 0 : index
      %13 = vector.load %arg6[%c0_12, %c0_13] : memref<2x32xf32, #tpu.memory_space<vmem>>, vector<2x32xf32>
      %14 = vector.broadcast %11 : vector<1x32xf32> to vector<2x32xf32>
      %15 = arith.mulf %13, %14 : vector<2x32xf32>
      %cst_14 = arith.constant dense<0.000000e+00> : vector<2xf32>
      %16 = vector.multi_reduction <add>, %15, %cst_14 [1] : vector<2x32xf32> to vector<2xf32>
      %17 = vector.shape_cast %16 : vector<2xf32> to vector<2x1xf32>
      %cst_15 = arith.constant 1.250000e-01 : f32
      %18 = vector.broadcast %cst_15 : f32 to vector<2x1xf32>
      %19 = arith.mulf %17, %18 : vector<2x1xf32>
      %20 = vector.broadcast %12 : f32 to vector<2x1xf32>
      %21 = arith.addf %19, %20 : vector<2x1xf32>
      %c0_16 = arith.constant 0 : index
      %c0_17 = arith.constant 0 : index
      %22 = vector.load %arg5[%c0_16, %c0_17] : memref<2x1xf32, #tpu.memory_space<vmem>>, vector<2x1xf32>
      tpu.vector_store %arg5[%c0_16, %c0_17], %21 {strides = array<i32>} : memref<2x1xf32, #tpu.memory_space<vmem>>, vector<2x1xf32>,
    } else {
    }
    return
  }
  func.func @transform_0(%arg0: i32, %arg1: i32) -> (i32, i32, i32) {
    %c0_i32 = arith.constant 0 : i32
    %c0_i32_0 = arith.constant 0 : i32
    return %arg0, %arg1, %c0_i32 : i32, i32, i32
  }
  func.func @transform_1(%arg0: i32, %arg1: i32) -> (i32, i32) {
    %c0_i32 = arith.constant 0 : i32
    %c0_i32_0 = arith.constant 0 : i32
    %c0_i32_1 = arith.constant 0 : i32
    return %c0_i32, %c0_i32_0 : i32, i32
  }
  func.func @transform_2(%arg0: i32, %arg1: i32) -> i32 {
    %c0_i32 = arith.constant 0 : i32
    %c0_i32_0 = arith.constant 0 : i32
    return %c0_i32 : i32
  }
  func.func @transform_3(%arg0: i32, %arg1: i32) -> (i32, i32) {
    %c0_i32 = arith.constant 0 : i32
    %c0_i32_0 = arith.constant 0 : i32
    return %arg0, %c0_i32 : i32, i32
  }
}

</mosaic_0001>

<llo_original>
// kernel: tpu_custom_call.1
$region0: #{tpu_custom_call.1}
  #allocation0 [shape = 'u32[]', space=smem, size = 0x4, offset = 0x4, fixed_abs, tag = 'smem constant byte address 0x4 - core index']
  #allocation1 [shape = 'u32[72,128]{1,0:T(1,128)}', space=vmem, size = 0x9000, scoped, tag = 'internal scratch']
  #allocation2 [shape = 'f32[2,32]{1,0:T(2,128)}', space=vmem, size = 0x400, scoped, tag = 'scratch operand']
  #allocation3 [shape = 'f32[1]{0:T(128)S(6)}', space=smem, size = 0x200, scoped, tag = 'scoped memory for tpu_custom_call.1']
  %s0 = inlined_call_operand.hbm [shape: f32[2,8,32], index: 0, kind: input, shape index: {}]
  %s1 = inlined_call_operand.vmem [shape: f32[1,32], index: 1, kind: input, shape index: {}]
  %s2 = inlined_call_operand.<no memory space> [shape: f32[1], index: 2, kind: input, shape index: {}]
  %s3 = inlined_call_operand.vmem [shape: f32[2,1], index: 3, kind: output, shape index: {}]
  %s4 = sld [smem:[#allocation0]]
  $region34: #{tpu_custom_call.1} parent=0
    _
  %s6 = ssub.s32 1, %s4
  %s7 = scalar_select 0, %s6, %s4
  %8 = sst [smem:[#allocation3]] %s2
  $region1: #{tpu_custom_call.1} parent=0
    #allocation4 [shape = 'u8[8192]{0}', space=vmem, size = 0x2000, scoped, tag = 'input window, operand 0, single buffered']
    #allocation5 [shape = 's32[1]{0}', space=sflag, size = 0x4, scoped, tag = 'scoped memory for tpu_custom_call.1']
    %9 = vsyncpa [#allocation5], 0
    // Predicated region
    $region2: #{tpu_custom_call.1} parent=1 // pred_check
      _
    $region3: #{tpu_custom_call.1} parent=1 // pred_check_branch
      %11 = sbr.rel (0) target = $region5
    $region4: #{tpu_custom_call.1} parent=1 // pred_region
      %13 = vsyncadd [#allocation5], 0
      %s14 = sshll.u32 %s0, 4
      %s15 = int_to_ptr.hbm [resolvable:$true] %s14
      %s16 = sshll.u32 [#allocation4], 4
      %s17 = int_to_ptr.vmem [resolvable:$true] %s16
      %22 = dma.hbm_to_vmem [thread:$0]  %s15, 256, %s17, [#allocation5], 128, 128, 8
    $region5: #{tpu_custom_call.1} parent=1 // pred_fallthru
      _
    // Predicated region
    $region6: #{tpu_custom_call.1} parent=1 // pred_check
      _
    $region7: #{tpu_custom_call.1} parent=1 // pred_check_branch
      %24 = sbr.rel (0) target = $region9
    $region8: #{tpu_custom_call.1} parent=1 // pred_region
      _
    $region9: #{tpu_custom_call.1} parent=1 // pred_fallthru
      _
    // Predicated region
    $region10: #{tpu_custom_call.1} parent=1 // pred_check
      _
    $region11: #{tpu_custom_call.1} parent=1 // pred_check_branch
      %26 = sbr.rel (0) target = $region13
    $region12: #{tpu_custom_call.1} parent=1 // pred_region
      _
    $region13: #{tpu_custom_call.1} parent=1 // pred_fallthru
      _
    // Predicated region
    $region14: #{tpu_custom_call.1} parent=1 // pred_check
      _
    $region15: #{tpu_custom_call.1} parent=1 // pred_check_branch
      %28 = sbr.rel (0) target = $region17
    $region16: #{tpu_custom_call.1} parent=1 // pred_region
      %30 = dma.done [#allocation5], 256
    $region17: #{tpu_custom_call.1} parent=1 // pred_fallthru
      _
    %p31 = scmp.eq.s32.totalorder 0, 0
    // Predicated region
    $region18: #{tpu_custom_call.1} parent=1 // pred_check
      %p32 = pneg %p31
    $region19: #{tpu_custom_call.1} parent=1 // pred_check_branch
      %34 = sbr.rel (%p32) target = $region21
    $region20: #{tpu_custom_call.1} parent=1 // pred_region
      %vm35 = vcmask 254976
      %36 = vst.msk [vmem:[#allocation2] sm:$0x3] %vm35, 0.0
    $region21: #{tpu_custom_call.1} parent=1 // pred_fallthru
      _
    %v37 = vld [vmem:[#allocation4] sm:$0xff]
    %v38 = vld [vmem:[#allocation4 + $0x8] sm:$0xff]
    %v39 = vld [vmem:[#allocation2] sm:$0x3]
    %vm40 = vcmask 261120
    %v41 = vsel %vm40, %v37, 0.0
    %v42 = vrot.slane %v41, 4
    %v43 = vadd.f32 %v41, %v42
    %v44 = vrot.slane %v43, 2
    %v45 = vadd.f32 %v43, %v44
    %v46 = vrot.slane %v45, 1
    %v47 = vadd.f32 %v45, %v46
    %v48 = vsel %vm40, %v38, 0.0
    %v49 = vrot.slane %v48, 4
    %v50 = vadd.f32 %v48, %v49
    %v51 = vrot.slane %v50, 2
    %v52 = vadd.f32 %v50, %v51
    %v53 = vrot.slane %v52, 1
    %v54 = vadd.f32 %v52, %v53
    %vm57 = vcmask 1041409
    %v58 = vsel %vm57, %v54, %v47
    %v60 = vadd.f32 %v39, %v58
    %vm61 = vcmask 254976
    %62 = vst.msk [vmem:[#allocation2] sm:$0x3] %vm61, %v60
    // Predicated region
    $region22: #{tpu_custom_call.1} parent=1 // pred_check
      %p63 = pneg %p31
    $region23: #{tpu_custom_call.1} parent=1 // pred_check_branch
      %65 = sbr.rel (%p63) target = $region25
    $region24: #{tpu_custom_call.1} parent=1 // pred_region
      %v66 = vld [vmem:[%s1] sm:$0x1]
      %s67 = sld [smem:[#allocation3]]
      %v68 = vld [vmem:[#allocation2] sm:$0x3]
      %v70 = vperm.slane %v66, 0
      %v72 = vmul.f32 %v68, %v70
      %v73 = vsel %vm61, %v72, 0.0
      %74 = vadd.xlane.f32.xlu0 %v73
      %v75 = vpop.xlane.xlu0 %74
      %v76 = vmul.f32 %v75, 0.125
      %v77 = vstv %s67
      %v78 = vadd.f32 %v76, %v77
      %vm79 = vcmask 1024
      %80 = vst.msk [vmem:[%s3] sm:$0x3] %vm79, %v78
    $region25: #{tpu_custom_call.1} parent=1 // pred_fallthru
      _
    // Predicated region
    $region26: #{tpu_custom_call.1} parent=1 // pred_check
      _
    $region27: #{tpu_custom_call.1} parent=1 // pred_check_branch
      %82 = sbr.rel (0) target = $region29
    $region28: #{tpu_custom_call.1} parent=1 // pred_region
      _
    $region29: #{tpu_custom_call.1} parent=1 // pred_fallthru
      _
    // Predicated region
    $region30: #{tpu_custom_call.1} parent=1 // pred_check
      _
    $region31: #{tpu_custom_call.1} parent=1 // pred_check_branch
      %84 = sbr.rel (0) target = $region33
    $region32: #{tpu_custom_call.1} parent=1 // pred_region
      _
    $region33: #{tpu_custom_call.1} parent=1 // pred_fallthru
      _
    %85 = vsyncpa [#allocation5], 1

</llo_original>
